<compile_context>
chip_gen: v5e
topology: v5e:2x2
jax: 0.10.0
libtpu: 0.0.40
codegen_flags: <defaults>
</compile_context>

<pallas_src>
import functools
import math

import jax
import jax.numpy as jnp
from jax.experimental import pallas as pl
from jax.experimental.pallas import tpu as pltpu

LANE = 128


def _round_up(v, m):
    return ((v + m - 1) // m) * m


def _pad2d(a, rows, cols):
    r, c = a.shape
    return jnp.pad(a, ((0, rows - r), (0, cols - c)))


def _vmem_ceiling_bytes():
    """Generation-aware scoped-VMEM budget (~3/4 of per-core VMEM)."""
    try:
        cap = int(pltpu.get_tpu_info().vmem_capacity_bytes)
    except Exception:
        cap = 64 << 20  # conservative: assume v7x (64 MiB per TensorCore)
    cap = max(cap, 32 << 20)
    return int(cap * 3 // 4)


def _quantize_adj(adj):
    """Global-scale symmetric int8 quantization of the (row-normalized) adjacency."""
    amax = jnp.maximum(jnp.max(jnp.abs(adj)), 1e-12).astype(jnp.float32)
    q = jnp.clip(jnp.round(adj * (127.0 / amax)), -127.0, 127.0).astype(jnp.int8)
    inv_scale = (amax / 127.0).astype(jnp.float32)
    return q, inv_scale


# --------------------------------------------------------------------------
# Kernels
# --------------------------------------------------------------------------
def _support_kernel(x_ref, w_ref, out_ref):
    """support = x @ W  (bf16 operands, f32 MXU accumulation, bf16 store)."""
    out_ref[...] = jnp.dot(
        x_ref[...], w_ref[...], preferred_element_type=jnp.float32
    ).astype(out_ref.dtype)


def _agg_relu_support2_kernel(scale_ref, adj_ref, s_ref, w2_ref, out_ref, acc_ref):
    """K-tiled aggregate with fused layer-2 support.

    acc += dequant(adj_blk) @ s1_blk       (int8 adj -> bf16, f32 accumulate)
    epilogue (last k): h = relu(acc * scale); out = h_bf16 @ W2 (bf16 store).
    """
    k = pl.program_id(1)

    @pl.when(k == 0)
    def _():
        acc_ref[...] = jnp.zeros_like(acc_ref)

    # int8 adjacency values (|q| <= 127) are exact in bf16; dequant scale is
    # applied once to the f32 accumulator in the epilogue.
    a = adj_ref[...].astype(jnp.float32).astype(jnp.bfloat16)
    acc_ref[...] += jnp.dot(a, s_ref[...], preferred_element_type=jnp.float32)

    @pl.when(k == pl.num_programs(1) - 1)
    def _():
        h = jnp.maximum(acc_ref[...] * scale_ref[0], 0.0).astype(jnp.bfloat16)
        # (F.dropout would be applied to `h` here in training mode.)
        out_ref[...] = jnp.dot(
            h, w2_ref[...], preferred_element_type=jnp.float32
        ).astype(out_ref.dtype)


def _agg_logsoftmax_kernel(scale_ref, adj_ref, s_ref, out_ref, acc_ref, *, num_class):
    """K-tiled aggregate with fused masked log_softmax epilogue (f32)."""
    k = pl.program_id(1)

    @pl.when(k == 0)
    def _():
        acc_ref[...] = jnp.zeros_like(acc_ref)

    a = adj_ref[...].astype(jnp.float32).astype(jnp.bfloat16)
    acc_ref[...] += jnp.dot(a, s_ref[...], preferred_element_type=jnp.float32)

    @pl.when(k == pl.num_programs(1) - 1)
    def _():
        logits = acc_ref[...] * scale_ref[0]
        lane = jax.lax.broadcasted_iota(jnp.int32, logits.shape, 1)
        valid = lane < num_class
        masked = jnp.where(valid, logits, -jnp.inf)
        m = jnp.max(masked, axis=1, keepdims=True)
        shifted = logits - m
        e = jnp.where(valid, jnp.exp(shifted), 0.0)
        lse = jnp.log(jnp.sum(e, axis=1, keepdims=True))
        out_ref[...] = (shifted - lse).astype(out_ref.dtype)


# --------------------------------------------------------------------------
# pallas_call wrappers
# --------------------------------------------------------------------------
def _support_matmul(x, w, tm, vmem_limit):
    n, f = x.shape
    p = w.shape[1]
    assert n % tm == 0
    return pl.pallas_call(
        _support_kernel,
        out_shape=jax.ShapeDtypeStruct((n, p), jnp.bfloat16),
        grid_spec=pltpu.PrefetchScalarGridSpec(
            num_scalar_prefetch=0,
            grid=(pl.cdiv(n, tm),),
            in_specs=[
                pl.BlockSpec((tm, f), lambda i: (i, 0)),   # x row block (streamed)
                pl.BlockSpec((f, p), lambda i: (0, 0)),    # weight resident
            ],
            out_specs=pl.BlockSpec((tm, p), lambda i: (i, 0)),
        ),
        compiler_params=pltpu.CompilerParams(
            dimension_semantics=("parallel",),
            vmem_limit_bytes=vmem_limit,
        ),
    )(x, w)


def _aggregate(kernel_fn, scale_arr, adj_q, support, extras, extra_specs,
               tm, tk, out_shape, vmem_limit):
    """out = epilogue(dequant(adj_q) @ support), tiled over rows (i) and K (k)."""
    n = adj_q.shape[0]
    p = support.shape[1]
    assert n % tm == 0 and n % tk == 0
    grid = (pl.cdiv(n, tm), pl.cdiv(n, tk))
    in_specs = [
        pl.BlockSpec(memory_space=pltpu.MemorySpace.SMEM),   # dequant scale (f32 scalar)
        pl.BlockSpec((tm, tk), lambda i, k: (i, k)),         # int8 adj block (streamed)
        pl.BlockSpec((tk, p), lambda i, k: (k, 0)),          # support block (streamed over k)
        *extra_specs,
    ]
    return pl.pallas_call(
        kernel_fn,
        out_shape=out_shape,
        grid_spec=pltpu.PrefetchScalarGridSpec(
            num_scalar_prefetch=0,
            grid=grid,
            in_specs=in_specs,
            out_specs=pl.BlockSpec((tm, out_shape.shape[1]), lambda i, k: (i, 0)),
            scratch_shapes=[pltpu.VMEM((tm, p), jnp.float32)],   # f32 accumulator
        ),
        compiler_params=pltpu.CompilerParams(
            dimension_semantics=("parallel", "arbitrary"),
            vmem_limit_bytes=vmem_limit,
        ),
    )(scale_arr, adj_q, support, *extras)


def gcn_forward(adj, x, w1, w2, *, row_tile=512, col_tile=512):
    """h = relu(adj @ (x @ W1)); logits = adj @ (h @ W2); log_softmax(logits, 1)."""
    n = adj.shape[0]
    f_in = x.shape[1]
    hidden = w1.shape[1]
    num_class = w2.shape[1]

    # ---- lane-dense padded dims & tiles ----------------------------------
    f_p = _round_up(f_in, LANE)
    hid_p = _round_up(hidden, LANE)
    cls_p = _round_up(num_class, LANE)

    n_p = _round_up(n, LANE)
    tm = min(_round_up(row_tile, 2 * LANE), n_p)   # row tile, multiple of 256 when possible
    tk = min(_round_up(col_tile, LANE), n_p)       # adjacency-column (K) tile
    lcm = tm * tk // math.gcd(tm, tk)
    n_p = _round_up(n_p, lcm)
    assert n_p % tm == 0 and n_p % tk == 0

    vmem_limit = _vmem_ceiling_bytes()

    # ---- operand prep -----------------------------------------------------
    # int8 adjacency halves HBM traffic on the O(N^2) operand; the dequant
    # scale is applied to the f32 accumulator inside the kernels.
    adj_q, inv_scale = _quantize_adj(adj)
    adj_q = _pad2d(adj_q, n_p, n_p)
    scale_arr = inv_scale.reshape(1)

    x_b = _pad2d(x, n_p, f_p).astype(jnp.bfloat16)
    w1_b = _pad2d(w1, f_p, hid_p).astype(jnp.bfloat16)
    w2_b = _pad2d(w2, hid_p, cls_p).astype(jnp.bfloat16)

    # ---- layer 1 support: s1 = x @ W1 (computed once, W1 resident) --------
    s1 = _support_matmul(x_b, w1_b, tm, vmem_limit)             # [n_p, hid_p] bf16

    # ---- layer 1 aggregate + fused layer 2 support -------------------------
    #   s2 = relu(adj @ s1) @ W2   — h never round-trips through HBM.
    s2 = _aggregate(
        _agg_relu_support2_kernel, scale_arr, adj_q, s1,
        extras=(w2_b,),
        extra_specs=(pl.BlockSpec((hid_p, cls_p), lambda i, k: (0, 0)),),  # W2 resident
        tm=tm, tk=tk,
        out_shape=jax.ShapeDtypeStruct((n_p, cls_p), jnp.bfloat16),
        vmem_limit=vmem_limit,
    )

    # ---- layer 2 aggregate + masked log_softmax epilogue -------------------
    out_pad = _aggregate(
        functools.partial(_agg_logsoftmax_kernel, num_class=num_class),
        scale_arr, adj_q, s2,
        extras=(), extra_specs=(),
        tm=tm, tk=tk,
        out_shape=jax.ShapeDtypeStruct((n_p, cls_p), jnp.float32),
        vmem_limit=vmem_limit,
    )
    return out_pad[:n, :num_class]


# --------------------------------------------------------------------------
# Init + references
# --------------------------------------------------------------------------
def init_gcn_params(key, input_size, hidden_size, num_class):
    """Matches GCNLayer.reset_parameters: uniform(-1/sqrt(out), 1/sqrt(out))."""
    k1, k2 = jax.random.split(key)
    std1 = 1.0 / math.sqrt(hidden_size)
    std2 = 1.0 / math.sqrt(num_class)
    w1 = jax.random.uniform(
        k1, (input_size, hidden_size), jnp.float32, minval=-std1, maxval=std1
    )
    w2 = jax.random.uniform(
        k2, (hidden_size, num_class), jnp.float32, minval=-std2, maxval=std2
    )
    return w1, w2


def reference_forward_f32(adj, x, w1, w2):
    h = jnp.maximum(adj @ (x @ w1), 0.0)
    logits = adj @ (h @ w2)
    return jax.nn.log_softmax(logits, axis=1)


def reference_forward_pipeline(adj, x, w1, w2):
    """Emulates the kernel pipeline: int8 adj, bf16 MXU operands, f32 accumulation."""
    bf = jnp.bfloat16
    adj_q, inv = _quantize_adj(adj)
    aq = adj_q.astype(jnp.float32).astype(bf)        # integer values, exact in bf16
    s1 = jnp.dot(x.astype(bf), w1.astype(bf), preferred_element_type=jnp.float32)
    s1 = s1.astype(bf)
    h = jnp.maximum(
        jnp.dot(aq, s1, preferred_element_type=jnp.float32) * inv, 0.0
    ).astype(bf)
    s2 = jnp.dot(h, w2.astype(bf), preferred_element_type=jnp.float32).astype(bf)
    logits = jnp.dot(aq, s2, preferred_element_type=jnp.float32) * inv
    return jax.nn.log_softmax(logits, axis=1)


if __name__ == "__main__":
    key = jax.random.PRNGKey(0)
    k_adj, k_x, k_w = jax.random.split(key, 3)

    # Small synthetic graph: N=32 nodes, input_size=16, hidden=32, num_class=8.
    N, input_size, hidden_size, num_class = 32, 16, 32, 8

    # Symmetric, row-normalized adjacency with self-loops (typical GCN input).
    a = (jax.random.uniform(k_adj, (N, N)) < 0.2).astype(jnp.float32)
    a = jnp.maximum(a, a.T) + jnp.eye(N, dtype=jnp.float32)
    adj = a / jnp.sum(a, axis=1, keepdims=True)

    x = jax.random.normal(k_x, (N, input_size), jnp.float32)
    w1, w2 = init_gcn_params(k_w, input_size, hidden_size, num_class)

    out = gcn_forward(adj, x, w1, w2)
    out = jax.block_until_ready(out)
    assert out.shape == (N, num_class)
    assert bool(jnp.all(jnp.isfinite(out)))

    ref_pipe = reference_forward_pipeline(adj, x, w1, w2)
    assert jnp.allclose(out, ref_pipe, atol=5e-3, rtol=1e-3), "mismatch vs pipeline ref"

    ref_f32 = reference_forward_f32(adj, x, w1, w2)
    assert jnp.allclose(out, ref_f32, atol=0.25), "mismatch vs f32 ref"

    print("KERNEL_OK")
</pallas_src>

<mosaic_0001>
module attributes {stable_mosaic.version = 11 : i64} {
  func.func @_support_kernel(%arg0: i32, %arg1: memref<128x128xbf16, #tpu.memory_space<vmem>>, %arg2: memref<128x128xbf16, #tpu.memory_space<vmem>>, %arg3: memref<128x128xbf16, #tpu.memory_space<vmem>>) attributes {dimension_semantics = [#tpu.dimension_semantics<parallel>], iteration_bounds = array<i64: 1>, scalar_prefetch = 0 : i64, scratch_operands = 0 : i64, tpu.core_type = #tpu.core_type<tc>, window_params = [{transform_indices = @transform_0, window_bounds = array<i64: 128, 128>}, {pipeline_mode = #tpu.pipeline_mode<synchronous>, transform_indices = @transform_1, window_bounds = array<i64: 128, 128>}, {transform_indices = @transform_2, window_bounds = array<i64: 128, 128>}]} {
    %c0 = arith.constant 0 : index
    %c0_0 = arith.constant 0 : index
    %0 = vector.load %arg1[%c0, %c0_0] : memref<128x128xbf16, #tpu.memory_space<vmem>>, vector<128x128xbf16>
    %c0_1 = arith.constant 0 : index
    %c0_2 = arith.constant 0 : index
    %1 = vector.load %arg2[%c0_1, %c0_2] : memref<128x128xbf16, #tpu.memory_space<vmem>>, vector<128x128xbf16>
    %cst = arith.constant dense<0.000000e+00> : vector<128x128xf32>
    %2 = tpu.matmul %0, %1, %cst {dimension_numbers = #tpu.dot_dimension_numbers<[1], [0], [0], [1], [0, 0, 1, 1], [], []>} : vector<128x128xbf16>, vector<128x128xbf16>, vector<128x128xf32> -> vector<128x128xf32>
    %3 = arith.truncf %2 : vector<128x128xf32> to vector<128x128xbf16>
    %c0_3 = arith.constant 0 : index
    %c0_4 = arith.constant 0 : index
    %4 = vector.load %arg3[%c0_3, %c0_4] : memref<128x128xbf16, #tpu.memory_space<vmem>>, vector<128x128xbf16>
    tpu.vector_store %arg3[%c0_3, %c0_4], %3 {strides = array<i32>} : memref<128x128xbf16, #tpu.memory_space<vmem>>, vector<128x128xbf16>,
    return
  }
  func.func @transform_0(%arg0: i32) -> (i32, i32) {
    %c0_i32 = arith.constant 0 : i32
    %c0_i32_0 = arith.constant 0 : i32
    return %arg0, %c0_i32 : i32, i32
  }
  func.func @transform_1(%arg0: i32) -> (i32, i32) {
    %c0_i32 = arith.constant 0 : i32
    %c0_i32_0 = arith.constant 0 : i32
    %c0_i32_1 = arith.constant 0 : i32
    return %c0_i32, %c0_i32_0 : i32, i32
  }
  func.func @transform_2(%arg0: i32) -> (i32, i32) {
    %c0_i32 = arith.constant 0 : i32
    %c0_i32_0 = arith.constant 0 : i32
    return %arg0, %c0_i32 : i32, i32
  }
}

</mosaic_0001>

<llo_original>
// kernel: tpu_custom_call.1
$region0: #{tpu_custom_call.1}
  #allocation0 [shape = 'u32[]', space=smem, size = 0x4, offset = 0x4, fixed_abs, tag = 'smem constant byte address 0x4 - core index']
  #allocation1 [shape = 'u32[72,128]{1,0:T(1,128)}', space=vmem, size = 0x9000, scoped, tag = 'internal scratch']
  %s0 = inlined_call_operand.hbm [shape: bf16[128,128], index: 0, kind: input, shape index: {}]
  %s1 = inlined_call_operand.hbm [shape: bf16[128,128], index: 1, kind: input, shape index: {}]
  %s2 = inlined_call_operand.hbm [shape: bf16[128,128], index: 2, kind: output, shape index: {}]
  %s3 = sld [smem:[#allocation0]]
  $region26: #{tpu_custom_call.1} parent=0
    _
  %s5 = ssub.s32 1, %s3
  %s6 = scalar_select 0, %s5, %s3
  $region1: #{tpu_custom_call.1} parent=0
    #allocation2 [shape = 'u8[32768]{0}', space=vmem, size = 0x8000, scoped, tag = 'input window, operand 0, single buffered']
    #allocation3 [shape = 's32[1]{0}', space=sflag, size = 0x4, scoped, tag = 'scoped memory for tpu_custom_call.1']
    #allocation4 [shape = 's32[1]{0}', space=sflag, size = 0x4, scoped, tag = 'scoped memory for tpu_custom_call.1']
    #allocation5 [shape = 'u8[32768]{0}', space=vmem, size = 0x8000, scoped, tag = 'input window, operand 1, single buffered']
    #allocation6 [shape = 's32[1]{0}', space=sflag, size = 0x4, scoped, tag = 'scoped memory for tpu_custom_call.1']
    #allocation7 [shape = 'u8[32768]{0}', space=vmem, size = 0x8000, scoped, tag = 'output window, operand 0, single buffered']
    %7 = vsyncpa [#allocation3], 0
    %8 = vsyncpa [#allocation6], 0
    %9 = vsyncpa [#allocation4], 0
    // Predicated region
    $region2: #{tpu_custom_call.1} parent=1 // pred_check
      _
    $region3: #{tpu_custom_call.1} parent=1 // pred_check_branch
      %11 = sbr.rel (0) target = $region5
    $region4: #{tpu_custom_call.1} parent=1 // pred_region
      %13 = vsyncadd [#allocation3], 0
      %s14 = sshll.u32 %s0, 4
      %s15 = int_to_ptr.hbm [resolvable:$true] %s14
      %s16 = sshll.u32 [#allocation2], 4
      %s17 = int_to_ptr.vmem [resolvable:$true] %s16
      %22 = dma.hbm_to_vmem [thread:$0]  %s15, 1024, %s17, [#allocation3], 64, 64, 4
    $region5: #{tpu_custom_call.1} parent=1 // pred_fallthru
      _
    // Predicated region
    $region6: #{tpu_custom_call.1} parent=1 // pred_check
      _
    $region7: #{tpu_custom_call.1} parent=1 // pred_check_branch
      %24 = sbr.rel (0) target = $region9
    $region8: #{tpu_custom_call.1} parent=1 // pred_region
      %26 = vsyncadd [#allocation6], 0
      %s27 = sshll.u32 %s1, 4
      %s28 = int_to_ptr.hbm [resolvable:$true] %s27
      %s29 = sshll.u32 [#allocation5], 4
      %s30 = int_to_ptr.vmem [resolvable:$true] %s29
      %35 = dma.hbm_to_vmem [thread:$0]  %s28, 1024, %s30, [#allocation6], 64, 64, 4
    $region9: #{tpu_custom_call.1} parent=1 // pred_fallthru
      _
    // Predicated region
    $region10: #{tpu_custom_call.1} parent=1 // pred_check
      _
    $region11: #{tpu_custom_call.1} parent=1 // pred_check_branch
      %37 = sbr.rel (0) target = $region13
    $region12: #{tpu_custom_call.1} parent=1 // pred_region
      %39 = dma.done [#allocation3], 1024
    $region13: #{tpu_custom_call.1} parent=1 // pred_fallthru
      _
    // Predicated region
    $region14: #{tpu_custom_call.1} parent=1 // pred_check
      _
    $region15: #{tpu_custom_call.1} parent=1 // pred_check_branch
      %41 = sbr.rel (0) target = $region17
    $region16: #{tpu_custom_call.1} parent=1 // pred_region
      %43 = dma.done [#allocation6], 1024
    $region17: #{tpu_custom_call.1} parent=1 // pred_fallthru
      _
    %v44 = vld [vmem:[#allocation2] sm:$0xf]
    %v45 = vld [vmem:[#allocation2 + $0x4] sm:$0xf]
    %v46 = vld [vmem:[#allocation2 + $0x8] sm:$0xf]
    %v47 = vld [vmem:[#allocation2 + $0xc] sm:$0xf]
    %v48 = vld [vmem:[#allocation2 + $0x10] sm:$0xf]
    %v49 = vld [vmem:[#allocation2 + $0x14] sm:$0xf]
    %v50 = vld [vmem:[#allocation2 + $0x18] sm:$0xf]
    %v51 = vld [vmem:[#allocation2 + $0x1c] sm:$0xf]
    %v52 = vld [vmem:[#allocation2 + $0x20] sm:$0xf]
    %v53 = vld [vmem:[#allocation2 + $0x24] sm:$0xf]
    %v54 = vld [vmem:[#allocation2 + $0x28] sm:$0xf]
    %v55 = vld [vmem:[#allocation2 + $0x2c] sm:$0xf]
    %v56 = vld [vmem:[#allocation2 + $0x30] sm:$0xf]
    %v57 = vld [vmem:[#allocation2 + $0x34] sm:$0xf]
    %v58 = vld [vmem:[#allocation2 + $0x38] sm:$0xf]
    %v59 = vld [vmem:[#allocation2 + $0x3c] sm:$0xf]
    %v60 = vld [vmem:[#allocation5] sm:$0xf]
    %v61 = vld [vmem:[#allocation5 + $0x4] sm:$0xf]
    %v62 = vld [vmem:[#allocation5 + $0x8] sm:$0xf]
    %v63 = vld [vmem:[#allocation5 + $0xc] sm:$0xf]
    %v64 = vld [vmem:[#allocation5 + $0x10] sm:$0xf]
    %v65 = vld [vmem:[#allocation5 + $0x14] sm:$0xf]
    %v66 = vld [vmem:[#allocation5 + $0x18] sm:$0xf]
    %v67 = vld [vmem:[#allocation5 + $0x1c] sm:$0xf]
    %v68 = vld [vmem:[#allocation5 + $0x20] sm:$0xf]
    %v69 = vld [vmem:[#allocation5 + $0x24] sm:$0xf]
    %v70 = vld [vmem:[#allocation5 + $0x28] sm:$0xf]
    %v71 = vld [vmem:[#allocation5 + $0x2c] sm:$0xf]
    %v72 = vld [vmem:[#allocation5 + $0x30] sm:$0xf]
    %v73 = vld [vmem:[#allocation5 + $0x34] sm:$0xf]
    %v74 = vld [vmem:[#allocation5 + $0x38] sm:$0xf]
    %v75 = vld [vmem:[#allocation5 + $0x3c] sm:$0xf]
    %v92 = vunpack.c.l.b16 %v44
    %v93 = vunpack.c.l.b16 %v45
    %v94 = vunpack.c.l.b16 %v46
    %v95 = vunpack.c.l.b16 %v47
    %v96 = vunpack.c.l.b16 %v48
    %v97 = vunpack.c.l.b16 %v49
    %v98 = vunpack.c.l.b16 %v50
    %v99 = vunpack.c.l.b16 %v51
    %v100 = vunpack.c.l.b16 %v52
    %v101 = vunpack.c.l.b16 %v53
    %v102 = vunpack.c.l.b16 %v54
    %v103 = vunpack.c.l.b16 %v55
    %v104 = vunpack.c.l.b16 %v56
    %v105 = vunpack.c.l.b16 %v57
    %v106 = vunpack.c.l.b16 %v58
    %v107 = vunpack.c.l.b16 %v59
    %v108 = vpack.c.b16 %v93, %v92
    %v109 = vpack.c.b16 %v95, %v94
    %v110 = vpack.c.b16 %v97, %v96
    %v111 = vpack.c.b16 %v99, %v98
    %v112 = vpack.c.b16 %v101, %v100
    %v113 = vpack.c.b16 %v103, %v102
    %v114 = vpack.c.b16 %v105, %v104
    %v115 = vpack.c.b16 %v107, %v106
    %v140 = vunpack.c.l.b16 %v60
    %v141 = vunpack.c.l.b16 %v61
    %v142 = vunpack.c.l.b16 %v62
    %v143 = vunpack.c.l.b16 %v63
    %v144 = vunpack.c.l.b16 %v64
    %v145 = vunpack.c.l.b16 %v65
    %v146 = vunpack.c.l.b16 %v66
    %v147 = vunpack.c.l.b16 %v67
    %v148 = vunpack.c.l.b16 %v68
    %v149 = vunpack.c.l.b16 %v69
    %v150 = vunpack.c.l.b16 %v70
    %v151 = vunpack.c.l.b16 %v71
    %v152 = vunpack.c.l.b16 %v72
    %v153 = vunpack.c.l.b16 %v73
    %v154 = vunpack.c.l.b16 %v74
    %v155 = vunpack.c.l.b16 %v75
    %v156 = vpack.c.b16 %v141, %v140
    %v157 = vpack.c.b16 %v143, %v142
    %v158 = vpack.c.b16 %v145, %v144
    %v159 = vpack.c.b16 %v147, %v146
    %v160 = vpack.c.b16 %v149, %v148
    %v161 = vpack.c.b16 %v151, %v150
    %v162 = vpack.c.b16 %v153, %v152
    %v163 = vpack.c.b16 %v155, %v154
    %172 = vmatpush.bf16.msra.mxu0 %v163
    %173 = vmatpush.bf16.msra.mxu0 %v162
    %174 = vmatpush.bf16.msra.mxu0 %v161
    %175 = vmatpush.bf16.msra.mxu0 %v160
    %176 = vmatpush.bf16.msra.mxu0 %v159
    %177 = vmatpush.bf16.msra.mxu0 %v158
    %178 = vmatpush.bf16.msra.mxu0 %v157
    %179 = vmatpush.bf16.msra.mxu0 %v156
    %180 = vmatmul.bf16.gmra.mxu0 %v108
    %v181 = vpop.f32.mrf.mxu0
    %v182 = vadd.f32 0.0, %v181
    %v183 = vpop.f32.mrf.mxu0
    %v184 = vadd.f32 0.0, %v183
    %185 = vmatmul.bf16.gmra.mxu0 %v109
    %v186 = vpop.f32.mrf.mxu0
    %v187 = vadd.f32 0.0, %v186
    %v188 = vpop.f32.mrf.mxu0
    %v189 = vadd.f32 0.0, %v188
    %190 = vmatmul.bf16.gmra.mxu0 %v110
    %v191 = vpop.f32.mrf.mxu0
    %v192 = vadd.f32 0.0, %v191
    %v193 = vpop.f32.mrf.mxu0
    %v194 = vadd.f32 0.0, %v193
    %195 = vmatmul.bf16.gmra.mxu0 %v111
    %v196 = vpop.f32.mrf.mxu0
    %v197 = vadd.f32 0.0, %v196
    %v198 = vpop.f32.mrf.mxu0
    %v199 = vadd.f32 0.0, %v198
    %200 = vmatmul.bf16.gmra.mxu0 %v112
    %v201 = vpop.f32.mrf.mxu0
    %v202 = vadd.f32 0.0, %v201
    %v203 = vpop.f32.mrf.mxu0
    %v204 = vadd.f32 0.0, %v203
    %205 = vmatmul.bf16.gmra.mxu0 %v113
    %v206 = vpop.f32.mrf.mxu0
    %v207 = vadd.f32 0.0, %v206
    %v208 = vpop.f32.mrf.mxu0
    %v209 = vadd.f32 0.0, %v208
    %210 = vmatmul.bf16.gmra.mxu0 %v114
    %v211 = vpop.f32.mrf.mxu0
    %v212 = vadd.f32 0.0, %v211
    %v213 = vpop.f32.mrf.mxu0
    %v214 = vadd.f32 0.0, %v213
    %215 = vmatmul.bf16.gmra.mxu0 %v115
    %v216 = vpop.f32.mrf.mxu0
    %v217 = vadd.f32 0.0, %v216
    %v218 = vpop.f32.mrf.mxu0
    %v219 = vadd.f32 0.0, %v218
    %220 = vdwg.mxu0
    %v221 = vpack.c.bf16 %v182, %v182
    %v222 = vpack.c.bf16 %v184, %v184
    %v223 = vpack.c.bf16 %v187, %v187
    %v224 = vpack.c.bf16 %v189, %v189
    %v225 = vpack.c.bf16 %v192, %v192
    %v226 = vpack.c.bf16 %v194, %v194
    %v227 = vpack.c.bf16 %v197, %v197
    %v228 = vpack.c.bf16 %v199, %v199
    %v229 = vpack.c.bf16 %v202, %v202
    %v230 = vpack.c.bf16 %v204, %v204
    %v231 = vpack.c.bf16 %v207, %v207
    %v232 = vpack.c.bf16 %v209, %v209
    %v233 = vpack.c.bf16 %v212, %v212
    %v234 = vpack.c.bf16 %v214, %v214
    %v235 = vpack.c.bf16 %v217, %v217
    %v236 = vpack.c.bf16 %v219, %v219
    %237 = vst [vmem:[#allocation7] sm:$0xf] %v221
    %238 = vst [vmem:[#allocation7 + $0x4] sm:$0xf] %v222
    %239 = vst [vmem:[#allocation7 + $0x8] sm:$0xf] %v223
    %240 = vst [vmem:[#allocation7 + $0xc] sm:$0xf] %v224
    %241 = vst [vmem:[#allocation7 + $0x10] sm:$0xf] %v225
    %242 = vst [vmem:[#allocation7 + $0x14] sm:$0xf] %v226
    %243 = vst [vmem:[#allocation7 + $0x18] sm:$0xf] %v227
    %244 = vst [vmem:[#allocation7 + $0x1c] sm:$0xf] %v228
    %245 = vst [vmem:[#allocation7 + $0x20] sm:$0xf] %v229
    %246 = vst [vmem:[#allocation7 + $0x24] sm:$0xf] %v230
    %247 = vst [vmem:[#allocation7 + $0x28] sm:$0xf] %v231
    %248 = vst [vmem:[#allocation7 + $0x2c] sm:$0xf] %v232
    %249 = vst [vmem:[#allocation7 + $0x30] sm:$0xf] %v233
    %250 = vst [vmem:[#allocation7 + $0x34] sm:$0xf] %v234
    %251 = vst [vmem:[#allocation7 + $0x38] sm:$0xf] %v235
    %252 = vst [vmem:[#allocation7 + $0x3c] sm:$0xf] %v236
    // Predicated region
    $region18: #{tpu_custom_call.1} parent=1 // pred_check
      _
    $region19: #{tpu_custom_call.1} parent=1 // pred_check_branch
      %254 = sbr.rel (0) target = $region21
    $region20: #{tpu_custom_call.1} parent=1 // pred_region
      %256 = vsyncadd [#allocation4], 0
      %s257 = sshll.u32 [#allocation7], 4
      %s258 = int_to_ptr.vmem [resolvable:$true] %s257
      %s259 = sshll.u32 %s2, 4
      %s260 = int_to_ptr.hbm [resolvable:$true] %s259
      %265 = dma.vmem_to_hbm [thread:$0]  %s258, 1024, %s260, [#allocation4], 64, 64, 4
    $region21: #{tpu_custom_call.1} parent=1 // pred_fallthru
      _
    // Predicated region
    $region22: #{tpu_custom_call.1} parent=1 // pred_check
      _
    $region23: #{tpu_custom_call.1} parent=1 // pred_check_branch
      %267 = sbr.rel (0) target = $region25
    $region24: #{tpu_custom_call.1} parent=1 // pred_region
      %269 = dma.done [#allocation4], 1024
    $region25: #{tpu_custom_call.1} parent=1 // pred_fallthru
      _
    %270 = vsyncpa [#allocation3], 1
    %271 = vsyncpa [#allocation6], 1
    %272 = vsyncpa [#allocation4], 1

</llo_original>
